<compile_context>
chip_gen: v7x
topology: tpu7x:2x2x1
jax: 0.10.0
libtpu: 0.0.40
codegen_flags: <defaults>
</compile_context>

<pallas_src>
import jax
import jax.numpy as jnp
from jax.experimental import pallas as pl
from jax.experimental.pallas import tpu as pltpu

GROUP = 8          # batch rows packed per lane-dense row (8 * 16 = 128 lanes)


def _round_up(n, m):
    return ((n + m - 1) // m) * m


def _block_diag(w, g):
    """(k, n) -> (g*k, g*n): g copies of w on the block diagonal."""
    k, n = w.shape
    eye = jnp.eye(g, dtype=w.dtype)
    return (eye[:, None, :, None] * w[None, :, None, :]).reshape(g * k, g * n)


def _group_params(ws, bs, input_dim, g=GROUP):
    """Fold the 8-way row grouping into the (tiny) weights.

    With xg[r, j*D + d] = x[g*r + j, d], running the MLP on the grouped layout with
    block-diagonal weights reproduces the dense math exactly (the extra MXU terms
    are exact zeros).
    """
    w1, w2, w3 = ws
    b1, b2, b3 = bs
    w1g = jnp.concatenate(
        [_block_diag(w1[:input_dim], g), _block_diag(w1[input_dim:], g)], axis=0)
    w2g = _block_diag(w2, g)
    w3g = _block_diag(w3, g)
    return (w1g, w2g, w3g), (jnp.tile(b1, (1, g)),
                             jnp.tile(b2, (1, g)),
                             jnp.tile(b3, (1, g)))


def mlp_trig_kernel(x_ref, w1_ref, b1_ref, w2_ref, b2_ref, w3_ref, b3_ref, o_ref):
    xg = x_ref[...]                                               # (R, 8*D) f32 lane-dense
    feat = jnp.concatenate([jnp.sin(xg), jnp.cos(xg)], axis=1)    # (R, 16*D)

    # Layer 1 (block-grouped): fused sin/cos concat matmul + bias + ReLU, all f32.
    h = jnp.dot(feat, w1_ref[...], preferred_element_type=jnp.float32) + b1_ref[...]
    h = jnp.maximum(h, 0.0)

    # Layer 2 + ReLU.
    h = jnp.dot(h, w2_ref[...], preferred_element_type=jnp.float32) + b2_ref[...]
    h = jnp.maximum(h, 0.0)

    # Output layer (grouped: 8*out_dim = 64 lanes, only real bytes stored).
    o = jnp.dot(h, w3_ref[...], preferred_element_type=jnp.float32) + b3_ref[...]
    o_ref[...] = o.astype(o_ref.dtype)


def _grouped_call(xg, wgs, bgs, tile_rows):
    """Run the kernel on grouped x (rows/8, 8*D). tile_rows = logical rows per tile."""
    w1g, w2g, w3g = wgs
    b1g, b2g, b3g = bgs
    rows_g, gin = xg.shape
    gout = w3g.shape[1]
    tr = tile_rows // GROUP
    nb = rows_g // tr
    assert nb * tr == rows_g, "internal: tile must evenly divide the call rows"

    def const_spec(a):
        # Constant block index -> DMA'd once, resident in VMEM for every tile.
        return pl.BlockSpec(a.shape, lambda i: (0, 0))

    cost = pl.CostEstimate(
        flops=2 * rows_g * (w1g.shape[0] * w1g.shape[1]
                            + w2g.shape[0] * w2g.shape[1]
                            + w3g.shape[0] * w3g.shape[1]),
        transcendentals=2 * rows_g * gin,
        bytes_accessed=4 * (xg.size + rows_g * gout
                            + w1g.size + w2g.size + w3g.size
                            + b1g.size + b2g.size + b3g.size),
    )

    return pl.pallas_call(
        mlp_trig_kernel,
        out_shape=jax.ShapeDtypeStruct((rows_g, gout), jnp.float32),
        grid_spec=pltpu.PrefetchScalarGridSpec(
            num_scalar_prefetch=0,
            grid=(nb,),
            in_specs=[
                pl.BlockSpec((tr, gin), lambda i: (i, 0)),   # x: streamed, lane-dense
                const_spec(w1g), const_spec(b1g),            # weights/biases: pinned
                const_spec(w2g), const_spec(b2g),
                const_spec(w3g), const_spec(b3g),
            ],
            out_specs=pl.BlockSpec((tr, gout), lambda i: (i, 0)),
        ),
        compiler_params=pltpu.CompilerParams(
            dimension_semantics=("parallel",),        # megacore split on v7x
            vmem_limit_bytes=32 * 1024 * 1024,        # headroom under v7x's 64 MiB
        ),
        cost_estimate=cost,
    )(xg, w1g, b1g, w2g, b2g, w3g, b3g)


def _run_rows(x_rows, wgs, bgs, tile_rows, out_dim):
    rows, d = x_rows.shape
    xg = x_rows.reshape(rows // GROUP, GROUP * d)      # free row-major regroup
    og = _grouped_call(xg, wgs, bgs, tile_rows)        # (rows/8, 8*out_dim)
    return og.reshape(rows, out_dim)                   # free row-major ungroup


def mlp_trig_forward(x, ws, bs, *, tm=16384):
    """x: (B, D) f32. ws: [(2D,H1),(H1,H2),(H2,O)] f32. bs: [(1,H1),(1,H2),(1,O)] f32."""
    B, D = x.shape
    out_dim = ws[-1].shape[1]
    wgs, bgs = _group_params(ws, bs, D)

    # Tile choice (logical rows). Multi-tile calls use a multiple of 64 so the
    # grouped block's sublane dim stays a multiple of 8; keep >= 2 tiles whenever
    # the batch is big enough that the second v7x TensorCore matters.
    tm = max(64, (tm // 64) * 64)
    if B >= 2 * tm:
        tile = tm
    elif B >= 1024:
        tile = max(64, (B // 128) * 64)        # two-ish roughly equal tiles
    else:
        tile = _round_up(max(B, 1), GROUP)     # single tile

    main = (B // tile) * tile
    outs = []
    if main:
        xm = x if main == B else x[:main]
        outs.append(_run_rows(xm, wgs, bgs, tile, out_dim))
    if main < B:                               # small tail: pads fewer than 8 rows
        tail = B - main
        tpad = _round_up(tail, GROUP)
        xt = x[main:]
        if tpad != tail:
            xt = jnp.pad(xt, ((0, tpad - tail), (0, 0)))
        outs.append(_run_rows(xt, wgs, bgs, tpad, out_dim)[:tail])
    return outs[0] if len(outs) == 1 else jnp.concatenate(outs, axis=0)


def init_params(key, input_dim, hidden_dims, output_dim):
    """Deterministic synthetic params. Weights stored as (in, out); biases as (1, out)."""
    dims = [input_dim * 2] + list(hidden_dims) + [output_dim]
    keys = jax.random.split(key, 2 * (len(dims) - 1))
    ws, bs = [], []
    for i in range(len(dims) - 1):
        fan_in, fan_out = dims[i], dims[i + 1]
        scale = 1.0 / jnp.sqrt(jnp.float32(fan_in))
        ws.append(jax.random.uniform(keys[2 * i], (fan_in, fan_out),
                                     minval=-scale, maxval=scale, dtype=jnp.float32))
        bs.append(jax.random.uniform(keys[2 * i + 1], (1, fan_out),
                                     minval=-scale, maxval=scale, dtype=jnp.float32))
    return ws, bs


def reference_forward(x, ws, bs):
    """Pure-JAX reference mirroring the PyTorch module (highest-precision dots)."""
    h = jnp.concatenate([jnp.sin(x), jnp.cos(x)], axis=1)
    for i in range(len(ws) - 1):
        h = jnp.maximum(
            jnp.dot(h, ws[i], precision=jax.lax.Precision.HIGHEST) + bs[i], 0.0)
    return jnp.dot(h, ws[-1], precision=jax.lax.Precision.HIGHEST) + bs[-1]


if __name__ == "__main__":
    # MLPTrig(input_dim=16, hidden_dims=[32, 32], output_dim=8).
    input_dim, hidden_dims, output_dim = 16, [32, 32], 8

    key = jax.random.PRNGKey(0)
    kx1, kx2, kx3, kp = jax.random.split(key, 4)
    ws, bs = init_params(kp, input_dim, hidden_dims, output_dim)

    def check(x, **kw):
        out = jax.block_until_ready(mlp_trig_forward(x, ws, bs, **kw))
        ref = reference_forward(x, ws, bs)
        assert out.shape == ref.shape, (out.shape, ref.shape)
        # f32 dots in-kernel -> only MXU f32 pass decomposition separates us from
        # the highest-precision reference (much tighter than the old bf16 path).
        assert jnp.allclose(out, ref, atol=2e-2, rtol=2e-2), \
            f"mismatch vs reference for batch={x.shape[0]}"
        return out

    # 1) Small aligned batch: single tile, no padding.
    check(jax.random.normal(kx1, (8, input_dim), dtype=jnp.float32))
    # 2) Ragged batch (not a multiple of 8): exercises the tail-pad path.
    check(jax.random.normal(kx2, (20, input_dim), dtype=jnp.float32))
    # 3) Multi-tile main call (2 grid steps) + tail call + concat.
    check(jax.random.normal(kx3, (300, input_dim), dtype=jnp.float32), tm=128)

    print("KERNEL_OK")
</pallas_src>

<mosaic_0001>
module attributes {stable_mosaic.version = 11 : i64} {
  func.func @mlp_trig_kernel(%arg0: i32, %arg1: memref<1x128xf32, #tpu.memory_space<vmem>>, %arg2: memref<256x256xf32, #tpu.memory_space<vmem>>, %arg3: memref<1x256xf32, #tpu.memory_space<vmem>>, %arg4: memref<256x256xf32, #tpu.memory_space<vmem>>, %arg5: memref<1x256xf32, #tpu.memory_space<vmem>>, %arg6: memref<256x64xf32, #tpu.memory_space<vmem>>, %arg7: memref<1x64xf32, #tpu.memory_space<vmem>>, %arg8: memref<1x64xf32, #tpu.memory_space<vmem>>) attributes {dimension_semantics = [#tpu.dimension_semantics<parallel>], iteration_bounds = array<i64: 1>, scalar_prefetch = 0 : i64, scratch_operands = 0 : i64, tpu.core_type = #tpu.core_type<tc>, window_params = [{transform_indices = @transform_0, window_bounds = array<i64: 1, 128>}, {pipeline_mode = #tpu.pipeline_mode<synchronous>, transform_indices = @transform_1, window_bounds = array<i64: 256, 256>}, {pipeline_mode = #tpu.pipeline_mode<synchronous>, transform_indices = @transform_2, window_bounds = array<i64: 1, 256>}, {pipeline_mode = #tpu.pipeline_mode<synchronous>, transform_indices = @transform_3, window_bounds = array<i64: 256, 256>}, {pipeline_mode = #tpu.pipeline_mode<synchronous>, transform_indices = @transform_4, window_bounds = array<i64: 1, 256>}, {pipeline_mode = #tpu.pipeline_mode<synchronous>, transform_indices = @transform_5, window_bounds = array<i64: 256, 64>}, {pipeline_mode = #tpu.pipeline_mode<synchronous>, transform_indices = @transform_6, window_bounds = array<i64: 1, 64>}, {transform_indices = @transform_7, window_bounds = array<i64: 1, 64>}]} {
    %c0 = arith.constant 0 : index
    %c0_0 = arith.constant 0 : index
    %0 = vector.load %arg1[%c0, %c0_0] : memref<1x128xf32, #tpu.memory_space<vmem>>, vector<1x128xf32>
    %1 = math.sin %0 : vector<1x128xf32>
    %2 = math.cos %0 : vector<1x128xf32>
    %3 = tpu.concatenate %1, %2 in 1 : vector<1x128xf32>, vector<1x128xf32> -> vector<1x256xf32>
    %c0_1 = arith.constant 0 : index
    %c0_2 = arith.constant 0 : index
    %4 = vector.load %arg2[%c0_1, %c0_2] : memref<256x256xf32, #tpu.memory_space<vmem>>, vector<256x256xf32>
    %cst = arith.constant dense<0.000000e+00> : vector<1x256xf32>
    %5 = tpu.matmul %3, %4, %cst {dimension_numbers = #tpu.dot_dimension_numbers<[1], [0], [0], [1], [0, 0, 1, 1], [], []>} : vector<1x256xf32>, vector<256x256xf32>, vector<1x256xf32> -> vector<1x256xf32>
    %c0_3 = arith.constant 0 : index
    %c0_4 = arith.constant 0 : index
    %6 = vector.load %arg3[%c0_3, %c0_4] : memref<1x256xf32, #tpu.memory_space<vmem>>, vector<1x256xf32>
    %7 = arith.addf %5, %6 : vector<1x256xf32>
    %cst_5 = arith.constant 0.000000e+00 : f32
    %8 = vector.broadcast %cst_5 : f32 to vector<1x256xf32>
    %9 = arith.maximumf %7, %8 : vector<1x256xf32>
    %c0_6 = arith.constant 0 : index
    %c0_7 = arith.constant 0 : index
    %10 = vector.load %arg4[%c0_6, %c0_7] : memref<256x256xf32, #tpu.memory_space<vmem>>, vector<256x256xf32>
    %cst_8 = arith.constant dense<0.000000e+00> : vector<1x256xf32>
    %11 = tpu.matmul %9, %10, %cst_8 {dimension_numbers = #tpu.dot_dimension_numbers<[1], [0], [0], [1], [0, 0, 1, 1], [], []>} : vector<1x256xf32>, vector<256x256xf32>, vector<1x256xf32> -> vector<1x256xf32>
    %c0_9 = arith.constant 0 : index
    %c0_10 = arith.constant 0 : index
    %12 = vector.load %arg5[%c0_9, %c0_10] : memref<1x256xf32, #tpu.memory_space<vmem>>, vector<1x256xf32>
    %13 = arith.addf %11, %12 : vector<1x256xf32>
    %cst_11 = arith.constant 0.000000e+00 : f32
    %14 = vector.broadcast %cst_11 : f32 to vector<1x256xf32>
    %15 = arith.maximumf %13, %14 : vector<1x256xf32>
    %c0_12 = arith.constant 0 : index
    %c0_13 = arith.constant 0 : index
    %16 = vector.load %arg6[%c0_12, %c0_13] : memref<256x64xf32, #tpu.memory_space<vmem>>, vector<256x64xf32>
    %cst_14 = arith.constant dense<0.000000e+00> : vector<1x64xf32>
    %17 = tpu.matmul %15, %16, %cst_14 {dimension_numbers = #tpu.dot_dimension_numbers<[1], [0], [0], [1], [0, 0, 1, 1], [], []>} : vector<1x256xf32>, vector<256x64xf32>, vector<1x64xf32> -> vector<1x64xf32>
    %c0_15 = arith.constant 0 : index
    %c0_16 = arith.constant 0 : index
    %18 = vector.load %arg7[%c0_15, %c0_16] : memref<1x64xf32, #tpu.memory_space<vmem>>, vector<1x64xf32>
    %19 = arith.addf %17, %18 : vector<1x64xf32>
    %c0_17 = arith.constant 0 : index
    %c0_18 = arith.constant 0 : index
    %20 = vector.load %arg8[%c0_17, %c0_18] : memref<1x64xf32, #tpu.memory_space<vmem>>, vector<1x64xf32>
    tpu.vector_store %arg8[%c0_17, %c0_18], %19 {strides = array<i32>} : memref<1x64xf32, #tpu.memory_space<vmem>>, vector<1x64xf32>,
    return
  }
  func.func @transform_0(%arg0: i32) -> (i32, i32) {
    %c0_i32 = arith.constant 0 : i32
    %c0_i32_0 = arith.constant 0 : i32
    return %arg0, %c0_i32 : i32, i32
  }
  func.func @transform_1(%arg0: i32) -> (i32, i32) {
    %c0_i32 = arith.constant 0 : i32
    %c0_i32_0 = arith.constant 0 : i32
    %c0_i32_1 = arith.constant 0 : i32
    return %c0_i32, %c0_i32_0 : i32, i32
  }
  func.func @transform_2(%arg0: i32) -> (i32, i32) {
    %c0_i32 = arith.constant 0 : i32
    %c0_i32_0 = arith.constant 0 : i32
    %c0_i32_1 = arith.constant 0 : i32
    return %c0_i32, %c0_i32_0 : i32, i32
  }
  func.func @transform_3(%arg0: i32) -> (i32, i32) {
    %c0_i32 = arith.constant 0 : i32
    %c0_i32_0 = arith.constant 0 : i32
    %c0_i32_1 = arith.constant 0 : i32
    return %c0_i32, %c0_i32_0 : i32, i32
  }
  func.func @transform_4(%arg0: i32) -> (i32, i32) {
    %c0_i32 = arith.constant 0 : i32
    %c0_i32_0 = arith.constant 0 : i32
    %c0_i32_1 = arith.constant 0 : i32
    return %c0_i32, %c0_i32_0 : i32, i32
  }
  func.func @transform_5(%arg0: i32) -> (i32, i32) {
    %c0_i32 = arith.constant 0 : i32
    %c0_i32_0 = arith.constant 0 : i32
    %c0_i32_1 = arith.constant 0 : i32
    return %c0_i32, %c0_i32_0 : i32, i32
  }
  func.func @transform_6(%arg0: i32) -> (i32, i32) {
    %c0_i32 = arith.constant 0 : i32
    %c0_i32_0 = arith.constant 0 : i32
    %c0_i32_1 = arith.constant 0 : i32
    return %c0_i32, %c0_i32_0 : i32, i32
  }
  func.func @transform_7(%arg0: i32) -> (i32, i32) {
    %c0_i32 = arith.constant 0 : i32
    %c0_i32_0 = arith.constant 0 : i32
    return %arg0, %c0_i32 : i32, i32
  }
}

</mosaic_0001>

<llo_original>
// kernel: tpu_custom_call.1
$region0: #{tpu_custom_call.1}
  #allocation0 [shape = 'u32[]', space=smem, size = 0x4, offset = 0x4, fixed_abs, tag = 'smem constant byte address 0x4 - core index']
  #allocation1 [shape = 'u32[144,128]{1,0:T(1,128)}', space=vmem, size = 0x12000, scoped, tag = 'internal scratch']
  %s0 = inlined_call_operand.vmem [shape: f32[1,128], index: 0, kind: input, shape index: {}]
  %s1 = inlined_call_operand.hbm [shape: f32[256,256], index: 1, kind: input, shape index: {}]
  %s2 = inlined_call_operand.vmem [shape: f32[1,256], index: 2, kind: input, shape index: {}]
  %s3 = inlined_call_operand.hbm [shape: f32[256,256], index: 3, kind: input, shape index: {}]
  %s4 = inlined_call_operand.vmem [shape: f32[1,256], index: 4, kind: input, shape index: {}]
  %s5 = inlined_call_operand.vmem [shape: f32[256,64], index: 5, kind: input, shape index: {}]
  %s6 = inlined_call_operand.vmem [shape: f32[1,64], index: 6, kind: input, shape index: {}]
  %s7 = inlined_call_operand.hbm [shape: f32[1,64], index: 7, kind: output, shape index: {}]
  %s8 = sld [smem:[#allocation0]]
  $region46: #{tpu_custom_call.1} parent=0
    _
  %s10 = ssub.s32 1, %s8
  %s11 = scalar_select 0, %s10, %s8
  $region1: #{tpu_custom_call.1} parent=0
    #allocation2 [shape = 'u8[262144]{0}', space=vmem, size = 0x40000, scoped, tag = 'input window, operand 1, single buffered']
    #allocation3 [shape = 's32[1]{0}', space=sflag, size = 0x4, scoped, tag = 'scoped memory for tpu_custom_call.1']
    #allocation4 [shape = 's32[1]{0}', space=sflag, size = 0x4, scoped, tag = 'scoped memory for tpu_custom_call.1']
    #allocation5 [shape = 'u8[262144]{0}', space=vmem, size = 0x40000, scoped, tag = 'input window, operand 3, single buffered']
    #allocation6 [shape = 's32[1]{0}', space=sflag, size = 0x4, scoped, tag = 'scoped memory for tpu_custom_call.1']
    #allocation7 [shape = 'u8[512]{0}', space=vmem, size = 0x400, scoped, tag = 'output window, operand 0, single buffered']
    %12 = vsyncpa [#allocation3], 0
    %13 = vsyncpa [#allocation6], 0
    %14 = vsyncpa [#allocation4], 0
    // Predicated region
    $region2: #{tpu_custom_call.1} parent=1 // pred_check
      _
    $region3: #{tpu_custom_call.1} parent=1 // pred_check_branch
      %16 = sbr.rel (0) target = $region5
    $region4: #{tpu_custom_call.1} parent=1 // pred_region
      _
    $region5: #{tpu_custom_call.1} parent=1 // pred_fallthru
      _
    // Predicated region
    $region6: #{tpu_custom_call.1} parent=1 // pred_check
      _
    $region7: #{tpu_custom_call.1} parent=1 // pred_check_branch
      %18 = sbr.rel (0) target = $region9
    $region8: #{tpu_custom_call.1} parent=1 // pred_region
      %s20 = ssub.s32 8192, 8192
      %21 = vsyncadd [#allocation3], %s20
      %s22 = sshll.u32 [#allocation2], 4
      %s23 = int_to_ptr.vmem [resolvable:$true] %s22
      %28 = dma.hbm_to_vmem [thread:$0]  %s1, 8192, %s23, [#allocation3], 256, 256, 16
    $region9: #{tpu_custom_call.1} parent=1 // pred_fallthru
      _
    // Predicated region
    $region10: #{tpu_custom_call.1} parent=1 // pred_check
      _
    $region11: #{tpu_custom_call.1} parent=1 // pred_check_branch
      %30 = sbr.rel (0) target = $region13
    $region12: #{tpu_custom_call.1} parent=1 // pred_region
      _
    $region13: #{tpu_custom_call.1} parent=1 // pred_fallthru
      _
    // Predicated region
    $region14: #{tpu_custom_call.1} parent=1 // pred_check
      _
    $region15: #{tpu_custom_call.1} parent=1 // pred_check_branch
      %32 = sbr.rel (0) target = $region17
    $region16: #{tpu_custom_call.1} parent=1 // pred_region
      %s34 = ssub.s32 8192, 8192
      %35 = vsyncadd [#allocation6], %s34
      %s36 = sshll.u32 [#allocation5], 4
      %s37 = int_to_ptr.vmem [resolvable:$true] %s36
      %42 = dma.hbm_to_vmem [thread:$0]  %s3, 8192, %s37, [#allocation6], 256, 256, 16
    $region17: #{tpu_custom_call.1} parent=1 // pred_fallthru
      _
    // Predicated region
    $region18: #{tpu_custom_call.1} parent=1 // pred_check
      _
    $region19: #{tpu_custom_call.1} parent=1 // pred_check_branch
      %44 = sbr.rel (0) target = $region21
    $region20: #{tpu_custom_call.1} parent=1 // pred_region
      _
    $region21: #{tpu_custom_call.1} parent=1 // pred_fallthru
      _
    // Predicated region
    $region22: #{tpu_custom_call.1} parent=1 // pred_check
      _
    $region23: #{tpu_custom_call.1} parent=1 // pred_check_branch
      %46 = sbr.rel (0) target = $region25
    $region24: #{tpu_custom_call.1} parent=1 // pred_region
      _
    $region25: #{tpu_custom_call.1} parent=1 // pred_fallthru
      _
    // Predicated region
    $region26: #{tpu_custom_call.1} parent=1 // pred_check
      _
    $region27: #{tpu_custom_call.1} parent=1 // pred_check_branch
      %48 = sbr.rel (0) target = $region29
    $region28: #{tpu_custom_call.1} parent=1 // pred_region
      _
    $region29: #{tpu_custom_call.1} parent=1 // pred_fallthru
      _
    // Predicated region
    $region30: #{tpu_custom_call.1} parent=1 // pred_check
      _
    $region31: #{tpu_custom_call.1} parent=1 // pred_check_branch
      %50 = sbr.rel (0) target = $region33
    $region32: #{tpu_custom_call.1} parent=1 // pred_region
      %51 = dma.done [#allocation3], 8192
    $region33: #{tpu_custom_call.1} parent=1 // pred_fallthru
      _
    // Predicated region
    $region34: #{tpu_custom_call.1} parent=1 // pred_check
      _
    $region35: #{tpu_custom_call.1} parent=1 // pred_check_branch
      %53 = sbr.rel (0) target = $region37
    $region36: #{tpu_custom_call.1} parent=1 // pred_region
      %54 = dma.done [#allocation6], 8192
    $region37: #{tpu_custom_call.1} parent=1 // pred_fallthru
      _
    %v55 = vld [vmem:[%s0] sm:$0x1]
    %v56 = vand.u32 2147483647, %v55
    %vm57 = vcmp.le.f32.partialorder %v56, 0.7853982
    %vm58 = vcmp.lt.s32.totalorder %v55, 0
    %v59 = vand.u32 %v55, 2139095040
    %v60 = vshrl.u32 %v59, 23
    %v61 = vsub.s32 %v60, 127
    %v62 = vand.u32 2147483647, %v55
    %v63 = vand.u32 %v62, 8388607
    %v64 = vor.u32 %v63, 8388608
    %v65 = vsub.s32 0, %v64
    %v66 = vadd.s32 %v61, 1
    %vm67 = vcmp.gt.s32.totalorder %v66, 0
    %v68 = vsel %vm67, %v66, 0
    %v69 = vshrl.u32 %v68, 5
    %v70 = vand.u32 %v68, 31
    %v71 = vsub.s32 32, %v70
    %v72 = vshrl.u32 683565275, %v71
    %v73 = vshll.u32 683565275, %v70
    %v74 = vshrl.u32 2475754826, %v71
    %v75 = vor.u32 %v73, %v74
    %v76 = vshll.u32 2475754826, %v70
    %v77 = vshrl.u32 2131351028, %v71
    %v78 = vor.u32 %v76, %v77
    %v79 = vshll.u32 2131351028, %v70
    %v80 = vshrl.u32 2102212464, %v71
    %v81 = vor.u32 %v79, %v80
    %v82 = vshll.u32 2102212464, %v70
    %v83 = vshrl.u32 920167782, %v71
    %v84 = vor.u32 %v82, %v83
    %v85 = vshll.u32 920167782, %v70
    %v86 = vshrl.u32 1326507024, %v71
    %v87 = vor.u32 %v85, %v86
    %vm88 = vcmp.lt.s32.totalorder %v69, 1
    %vm89 = vcmp.lt.s32.totalorder %v69, 2
    %vm90 = vcmp.lt.s32.totalorder %v69, 3
    %vm91 = vcmp.lt.s32.totalorder %v69, 4
    %v92 = vsel %vm88, %v72, %v75
    %v93 = vsel %vm91, %v81, 2102212464
    %v94 = vsel %vm90, %v78, %v93
    %v95 = vsel %vm89, %v92, %v94
    %v96 = vsel %vm88, %v75, %v78
    %v97 = vsel %vm91, %v84, 920167782
    %v98 = vsel %vm90, %v81, %v97
    %v99 = vsel %vm89, %v96, %v98
    %v100 = vsel %vm88, %v78, %v81
    %v101 = vsel %vm91, %v87, 1326507024
    %v102 = vsel %vm90, %v84, %v101
    %v103 = vsel %vm89, %v100, %v102
    %v104 = vshll.u32 %v64, 8
    %v105 = vmul.u32.u64.compose %v104, %v103
    %v106 = vextract.low.u32 %v105
    %v107 = vextract.high.u32 %v105
    %v108 = vmul.u32.u64.compose %v104, %v99
    %v109 = vextract.low.u32 %v108
    %v110 = vextract.high.u32 %v108
    %v111 = vmul.u32 %v104, %v95
    %v112 = vadd.s32 %v107, %v109
    %vm113 = vc.u32 %v107, %v109
    %v114 = vadd.s32 %v110, 1
    %v115 = vsel %vm113, %v114, %v110
    %v116 = vadd.s32 %v111, %v115
    %v117 = vadd.s32 %v116, 536870912
    %v118 = vshrl.u32 %v117, 30
    %v119 = vshll.u32 %v118, 30
    %v120 = vsub.s32 %v116, %v119
    %vm121 = vcmp.lt.s32.totalorder %v120, 0
    %v122 = vsub.s32 0, %v120
    %v123 = vsel %vm121, %v122, %v120
    %v124 = vclz %v123
    %v125 = vsub.s32 %v124, 2
    %vm126 = vcmp.gt.s32.totalorder 0, %v125
    %v127 = vsel %vm126, 0, %v125
    %v128 = vsub.s32 32, %v127
    %v129 = vshll.u32 %v120, %v127
    %v130 = vshrl.u32 %v112, %v128
    %v131 = vor.u32 %v129, %v130
    %v132 = vsub.s32 4294967266, %v127
    %v133 = vadd.s32 %v132, 127
    %v134 = vshll.u32 %v133, 23
    %v135 = vor.u32 4788187, %v134
    %v136 = vand.u32 2147483647, %v135
    %v138 = vcvt.s32.f32 %v131
    %v139 = vmul.f32 %v138, %v136
    %v140 = vxor.u32 %v139, 2147483648
    %v141 = vsel %vm58, %v140, %v139
    %v142 = vsub.s32 4, %v118
    %v143 = vsel %vm58, %v142, %v118
    %v144 = vsel %vm57, %v55, %v141
    %v145 = vsel %vm57, 0, %v143
    %v146 = vcosq.f32.pop %v144
    %v147 = vsinq.f32.pop %v144
    %vm148 = vweird.f32 %v55
    %v149 = vadd.s32 %v145, 3
    %v150 = vand.u32 %v149, 3
    %vm151 = vcmp.lt.s32.totalorder %v150, 2
    %vm152 = vcmp.eq.s32.totalorder %v150, 0
    %v153 = vxor.u32 %v147, 2147483648
    %v154 = vsel %vm152, %v146, %v153
    %vm155 = vcmp.eq.s32.totalorder %v150, 2
    %v156 = vxor.u32 %v146, 2147483648
    %v157 = vsel %vm155, %v156, %v147
    %v158 = vsel %vm151, %v154, %v157
    %v159 = vsel %vm148, nan, %v158
    %v160 = vand.u32 2147483647, %v55
    %vm161 = vcmp.le.f32.partialorder %v160, 0.7853982
    %vm162 = vcmp.lt.s32.totalorder %v55, 0
    %v163 = vand.u32 %v55, 2139095040
    %v164 = vshrl.u32 %v163, 23
    %v165 = vsub.s32 %v164, 127
    %v166 = vand.u32 2147483647, %v55
    %v167 = vand.u32 %v166, 8388607
    %v168 = vor.u32 %v167, 8388608
    %v169 = vsub.s32 0, %v168
    %v170 = vadd.s32 %v165, 1
    %vm171 = vcmp.gt.s32.totalorder %v170, 0
    %v172 = vsel %vm171, %v170, 0
    %v173 = vshrl.u32 %v172, 5
    %v174 = vand.u32 %v172, 31
    %v175 = vsub.s32 32, %v174
    %v176 = vshrl.u32 683565275, %v175
    %v177 = vshll.u32 683565275, %v174
    %v178 = vshrl.u32 2475754826, %v175
    %v179 = vor.u32 %v177, %v178
    %v180 = vshll.u32 2475754826, %v174
    %v181 = vshrl.u32 2131351028, %v175
    %v182 = vor.u32 %v180, %v181
    %v183 = vshll.u32 2131351028, %v174
    %v184 = vshrl.u32 2102212464, %v175
    %v185 = vor.u32 %v183, %v184
    %v186 = vshll.u32 2102212464, %v174
    %v187 = vshrl.u32 920167782, %v175
    %v188 = vor.u32 %v186, %v187
    %v189 = vshll.u32 920167782, %v174
    %v190 = vshrl.u32 1326507024, %v175
    %v191 = vor.u32 %v189, %v190
    %vm192 = vcmp.lt.s32.totalorder %v173, 1
    %vm193 = vcmp.lt.s32.totalorder %v173, 2
    %vm194 = vcmp.lt.s32.totalorder %v173, 3
    %vm195 = vcmp.lt.s32.totalorder %v173, 4
    %v196 = vsel %vm192, %v176, %v179
    %v197 = vsel %vm195, %v185, 2102212464
    %v198 = vsel %vm194, %v182, %v197
    %v199 = vsel %vm193, %v196, %v198
    %v200 = vsel %vm192, %v179, %v182
    %v201 = vsel %vm195, %v188, 920167782
    %v202 = vsel %vm194, %v185, %v201
    %v203 = vsel %vm193, %v200, %v202
    %v204 = vsel %vm192, %v182, %v185
    %v205 = vsel %vm195, %v191, 1326507024
    %v206 = vsel %vm194, %v188, %v205
    %v207 = vsel %vm193, %v204, %v206
    %v208 = vshll.u32 %v168, 8
    %v209 = vmul.u32.u64.compose %v208, %v207
    %v210 = vextract.low.u32 %v209
    %v211 = vextract.high.u32 %v209
    %v212 = vmul.u32.u64.compose %v208, %v203
    %v213 = vextract.low.u32 %v212
    %v214 = vextract.high.u32 %v212
    %v215 = vmul.u32 %v208, %v199
    %v216 = vadd.s32 %v211, %v213
    %vm217 = vc.u32 %v211, %v213
    %v218 = vadd.s32 %v214, 1
    %v219 = vsel %vm217, %v218, %v214
    %v220 = vadd.s32 %v215, %v219
    %v221 = vadd.s32 %v220, 536870912
    %v222 = vshrl.u32 %v221, 30
    %v223 = vshll.u32 %v222, 30
    %v224 = vsub.s32 %v220, %v223
    %vm225 = vcmp.lt.s32.totalorder %v224, 0
    %v226 = vsub.s32 0, %v224
    %v227 = vsel %vm225, %v226, %v224
    %v228 = vclz %v227
    %v229 = vsub.s32 %v228, 2
    %vm230 = vcmp.gt.s32.totalorder 0, %v229
    %v231 = vsel %vm230, 0, %v229
    %v232 = vsub.s32 32, %v231
    %v233 = vshll.u32 %v224, %v231
    %v234 = vshrl.u32 %v216, %v232
    %v235 = vor.u32 %v233, %v234
    %v236 = vsub.s32 4294967266, %v231
    %v237 = vadd.s32 %v236, 127
    %v238 = vshll.u32 %v237, 23
    %v239 = vor.u32 4788187, %v238
    %v240 = vand.u32 2147483647, %v239
    %v242 = vcvt.s32.f32 %v235
    %v243 = vmul.f32 %v242, %v240
    %v244 = vxor.u32 %v243, 2147483648
    %v245 = vsel %vm162, %v244, %v243
    %v246 = vsub.s32 4, %v222
    %v247 = vsel %vm162, %v246, %v222
    %v248 = vsel %vm161, %v55, %v245
    %v249 = vsel %vm161, 0, %v247
    %v250 = vcosq.f32.pop %v248
    %v251 = vsinq.f32.pop %v248
    %vm252 = vweird.f32 %v55
    %v253 = vand.u32 %v249, 3
    %vm254 = vcmp.lt.s32.totalorder %v253, 2
    %vm255 = vcmp.eq.s32.totalorder %v253, 0
    %v256 = vxor.u32 %v251, 2147483648
    %v257 = vsel %vm255, %v250, %v256
    %vm258 = vcmp.eq.s32.totalorder %v253, 2
    %v259 = vxor.u32 %v250, 2147483648
    %v260 = vsel %vm258, %v259, %v251
    %v261 = vsel %vm254, %v257, %v260
    %v262 = vsel %vm252, nan, %v261
    %v263 = vld [vmem:[#allocation2] sm:$0xff]
    %v264 = vld [vmem:[#allocation2 + $0x8] sm:$0xff]
    %v265 = vld [vmem:[#allocation2 + $0x10] sm:$0xff]
    %v266 = vld [vmem:[#allocation2 + $0x18] sm:$0xff]
    %v267 = vld [vmem:[#allocation2 + $0x20] sm:$0xff]
    %v268 = vld [vmem:[#allocation2 + $0x28] sm:$0xff]
    %v269 = vld [vmem:[#allocation2 + $0x30] sm:$0xff]
    %v270 = vld [vmem:[#allocation2 + $0x38] sm:$0xff]
    %v271 = vld [vmem:[#allocation2 + $0x40] sm:$0xff]
    %v272 = vld [vmem:[#allocation2 + $0x48] sm:$0xff]
    %v273 = vld [vmem:[#allocation2 + $0x50] sm:$0xff]
    %v274 = vld [vmem:[#allocation2 + $0x58] sm:$0xff]
    %v275 = vld [vmem:[#allocation2 + $0x60] sm:$0xff]
    %v276 = vld [vmem:[#allocation2 + $0x68] sm:$0xff]
    %v277 = vld [vmem:[#allocation2 + $0x70] sm:$0xff]
    %v278 = vld [vmem:[#allocation2 + $0x78] sm:$0xff]
    %v279 = vld [vmem:[#allocation2 + $0x80] sm:$0xff]
    %v280 = vld [vmem:[#allocation2 + $0x88] sm:$0xff]
    %v281 = vld [vmem:[#allocation2 + $0x90] sm:$0xff]
    %v282 = vld [vmem:[#allocation2 + $0x98] sm:$0xff]
    %v283 = vld [vmem:[#allocation2 + $0xa0] sm:$0xff]
    %v284 = vld [vmem:[#allocation2 + $0xa8] sm:$0xff]
    %v285 = vld [vmem:[#allocation2 + $0xb0] sm:$0xff]
    %v286 = vld [vmem:[#allocation2 + $0xb8] sm:$0xff]
    %v287 = vld [vmem:[#allocation2 + $0xc0] sm:$0xff]
    %v288 = vld [vmem:[#allocation2 + $0xc8] sm:$0xff]
    %v289 = vld [vmem:[#allocation2 + $0xd0] sm:$0xff]
    %v290 = vld [vmem:[#allocation2 + $0xd8] sm:$0xff]
    %v291 = vld [vmem:[#allocation2 + $0xe0] sm:$0xff]
    %v292 = vld [vmem:[#allocation2 + $0xe8] sm:$0xff]
    %v293 = vld [vmem:[#allocation2 + $0xf0] sm:$0xff]
    %v294 = vld [vmem:[#allocation2 + $0xf8] sm:$0xff]
    %v295 = vld [vmem:[#allocation2 + $0x100] sm:$0xff]
    %v296 = vld [vmem:[#allocation2 + $0x108] sm:$0xff]
    %v297 = vld [vmem:[#allocation2 + $0x110] sm:$0xff]
    %v298 = vld [vmem:[#allocation2 + $0x118] sm:$0xff]
    %v299 = vld [vmem:[#allocation2 + $0x120] sm:$0xff]
    %v300 = vld [vmem:[#allocation2 + $0x128] sm:$0xff]
    %v301 = vld [vmem:[#allocation2 + $0x130] sm:$0xff]
    %v302 = vld [vmem:[#allocation2 + $0x138] sm:$0xff]
    %v303 = vld [vmem:[#allocation2 + $0x140] sm:$0xff]
    %v304 = vld [vmem:[#allocation2 + $0x148] sm:$0xff]
    %v305 = vld [vmem:[#allocation2 + $0x150] sm:$0xff]
    %v306 = vld [vmem:[#allocation2 + $0x158] sm:$0xff]
    %v307 = vld [vmem:[#allocation2 + $0x160] sm:$0xff]
    %v308 = vld [vmem:[#allocation2 + $0x168] sm:$0xff]
    %v309 = vld [vmem:[#allocation2 + $0x170] sm:$0xff]
    %v310 = vld [vmem:[#allocation2 + $0x178] sm:$0xff]
    %v311 = vld [vmem:[#allocation2 + $0x180] sm:$0xff]
    %v312 = vld [vmem:[#allocation2 + $0x188] sm:$0xff]
    %v313 = vld [vmem:[#allocation2 + $0x190] sm:$0xff]
    %v314 = vld [vmem:[#allocation2 + $0x198] sm:$0xff]
    %v315 = vld [vmem:[#allocation2 + $0x1a0] sm:$0xff]
    %v316 = vld [vmem:[#allocation2 + $0x1a8] sm:$0xff]
    %v317 = vld [vmem:[#allocation2 + $0x1b0] sm:$0xff]
    %v318 = vld [vmem:[#allocation2 + $0x1b8] sm:$0xff]
    %v319 = vld [vmem:[#allocation2 + $0x1c0] sm:$0xff]
    %v320 = vld [vmem:[#allocation2 + $0x1c8] sm:$0xff]
    %v321 = vld [vmem:[#allocation2 + $0x1d0] sm:$0xff]
    %v322 = vld [vmem:[#allocation2 + $0x1d8] sm:$0xff]
    %v323 = vld [vmem:[#allocation2 + $0x1e0] sm:$0xff]
    %v324 = vld [vmem:[#allocation2 + $0x1e8] sm:$0xff]
    %v325 = vld [vmem:[#allocation2 + $0x1f0] sm:$0xff]
    %v326 = vld [vmem:[#allocation2 + $0x1f8] sm:$0xff]
    %v327 = vld [vmem:[%s2] sm:$0x3]
    %v329 = vlaneseq
    %v330 = vshrl.u32 %v329, 7
    %v331 = vsub.s32 0, %v330
    %v332 = vrot.slane %v327, %v331
    %v333 = vlaneseq
    %v334 = vshrl.u32 %v333, 7
    %v335 = vsub.s32 1, %v334
    %v336 = vrot.slane %v327, %v335
    %339 = vmatprep.subr.mxu0 %v264
    %340 = vmatpush1.msra.mxu0 %v263
    %341 = vmatprep.subr.mxu0 %v266
    %342 = vmatpush1.msra.mxu0 %v265
    %343 = vmatprep.subr.mxu0 %v268
    %344 = vmatpush1.msra.mxu0 %v267
    %345 = vmatprep.subr.mxu0 %v270
    %346 = vmatpush1.msra.mxu0 %v269
    %347 = vmatprep.subr.mxu0 %v272
    %348 = vmatpush1.msra.mxu0 %v271
    %349 = vmatprep.subr.mxu0 %v274
    %350 = vmatpush1.msra.mxu0 %v273
    %351 = vmatprep.subr.mxu0 %v276
    %352 = vmatpush1.msra.mxu0 %v275
    %353 = vmatprep.subr.mxu0 %v278
    %354 = vmatpush1.msra.mxu0 %v277
    %355 = vmatprep.subr.mxu0 %v280
    %356 = vmatpush1.msra.mxu0 %v279
    %357 = vmatprep.subr.mxu0 %v282
    %358 = vmatpush1.msra.mxu0 %v281
    %359 = vmatprep.subr.mxu0 %v284
    %360 = vmatpush1.msra.mxu0 %v283
    %361 = vmatprep.subr.mxu0 %v286
    %362 = vmatpush1.msra.mxu0 %v285
    %363 = vmatprep.subr.mxu0 %v288
    %364 = vmatpush1.msra.mxu0 %v287
    %365 = vmatprep.subr.mxu0 %v290
    %366 = vmatpush1.msra.mxu0 %v289
    %367 = vmatprep.subr.mxu0 %v292
    %368 = vmatpush1.msra.mxu0 %v291
    %369 = vmatprep.subr.mxu0 %v294
    %370 = vmatpush1.msra.mxu0 %v293
    %371 = vmatprep.subr.mxu0 %v296
    %372 = vmatpush1.msra.mxu0 %v295
    %373 = vmatprep.subr.mxu0 %v298
    %374 = vmatpush1.msra.mxu0 %v297
    %375 = vmatprep.subr.mxu0 %v300
    %376 = vmatpush1.msra.mxu0 %v299
    %377 = vmatprep.subr.mxu0 %v302
    %378 = vmatpush1.msra.mxu0 %v301
    %379 = vmatprep.subr.mxu0 %v304
    %380 = vmatpush1.msra.mxu0 %v303
    %381 = vmatprep.subr.mxu0 %v306
    %382 = vmatpush1.msra.mxu0 %v305
    %383 = vmatprep.subr.mxu0 %v308
    %384 = vmatpush1.msra.mxu0 %v307
    %385 = vmatprep.subr.mxu0 %v310
    %386 = vmatpush1.msra.mxu0 %v309
    %387 = vmatprep.subr.mxu0 %v312
    %388 = vmatpush1.msra.mxu0 %v311
    %389 = vmatprep.subr.mxu0 %v314
    %390 = vmatpush1.msra.mxu0 %v313
    %391 = vmatprep.subr.mxu0 %v316
    %392 = vmatpush1.msra.mxu0 %v315
    %393 = vmatprep.subr.mxu0 %v318
    %394 = vmatpush1.msra.mxu0 %v317
    %395 = vmatprep.subr.mxu0 %v320
    %396 = vmatpush1.msra.mxu0 %v319
    %397 = vmatprep.subr.mxu0 %v322
    %398 = vmatpush1.msra.mxu0 %v321
    %399 = vmatprep.subr.mxu0 %v324
    %400 = vmatpush1.msra.mxu0 %v323
    %401 = vmatprep.subr.mxu0 %v326
    %402 = vmatpush1.msra.mxu0 %v325
    %403 = vmatprep.mubr.f32.mxu0 %v262
    %404 = vmatmul.mubr.f32.gmra.mrb[0].mxu0 %v159
    %v405 = vpop.f32.mrb[0].mxu0
    %v406 = vadd.f32 %v332, %v405
    %v407 = vpop.f32.mrb[0].mxu0
    %v408 = vadd.f32 %v336, %v407
    %409 = vdwg.mxu0
    %v410 = vmax.f32 %v406, 0.0
    %v411 = vmax.f32 %v408, 0.0
    %v412 = vld [vmem:[#allocation5] sm:$0xff]
    %v413 = vld [vmem:[#allocation5 + $0x8] sm:$0xff]
    %v414 = vld [vmem:[#allocation5 + $0x10] sm:$0xff]
    %v415 = vld [vmem:[#allocation5 + $0x18] sm:$0xff]
    %v416 = vld [vmem:[#allocation5 + $0x20] sm:$0xff]
    %v417 = vld [vmem:[#allocation5 + $0x28] sm:$0xff]
    %v418 = vld [vmem:[#allocation5 + $0x30] sm:$0xff]
    %v419 = vld [vmem:[#allocation5 + $0x38] sm:$0xff]
    %v420 = vld [vmem:[#allocation5 + $0x40] sm:$0xff]
    %v421 = vld [vmem:[#allocation5 + $0x48] sm:$0xff]
    %v422 = vld [vmem:[#allocation5 + $0x50] sm:$0xff]
    %v423 = vld [vmem:[#allocation5 + $0x58] sm:$0xff]
    %v424 = vld [vmem:[#allocation5 + $0x60] sm:$0xff]
    %v425 = vld [vmem:[#allocation5 + $0x68] sm:$0xff]
    %v426 = vld [vmem:[#allocation5 + $0x70] sm:$0xff]
    %v427 = vld [vmem:[#allocation5 + $0x78] sm:$0xff]
    %v428 = vld [vmem:[#allocation5 + $0x80] sm:$0xff]
    %v429 = vld [vmem:[#allocation5 + $0x88] sm:$0xff]
    %v430 = vld [vmem:[#allocation5 + $0x90] sm:$0xff]
    %v431 = vld [vmem:[#allocation5 + $0x98] sm:$0xff]
    %v432 = vld [vmem:[#allocation5 + $0xa0] sm:$0xff]
    %v433 = vld [vmem:[#allocation5 + $0xa8] sm:$0xff]
    %v434 = vld [vmem:[#allocation5 + $0xb0] sm:$0xff]
    %v435 = vld [vmem:[#allocation5 + $0xb8] sm:$0xff]
    %v436 = vld [vmem:[#allocation5 + $0xc0] sm:$0xff]
    %v437 = vld [vmem:[#allocation5 + $0xc8] sm:$0xff]
    %v438 = vld [vmem:[#allocation5 + $0xd0] sm:$0xff]
    %v439 = vld [vmem:[#allocation5 + $0xd8] sm:$0xff]
    %v440 = vld [vmem:[#allocation5 + $0xe0] sm:$0xff]
    %v441 = vld [vmem:[#allocation5 + $0xe8] sm:$0xff]
    %v442 = vld [vmem:[#allocation5 + $0xf0] sm:$0xff]
    %v443 = vld [vmem:[#allocation5 + $0xf8] sm:$0xff]
    %v444 = vld [vmem:[#allocation5 + $0x100] sm:$0xff]
    %v445 = vld [vmem:[#allocation5 + $0x108] sm:$0xff]
    %v446 = vld [vmem:[#allocation5 + $0x110] sm:$0xff]
    %v447 = vld [vmem:[#allocation5 + $0x118] sm:$0xff]
    %v448 = vld [vmem:[#allocation5 + $0x120] sm:$0xff]
    %v449 = vld [vmem:[#allocation5 + $0x128] sm:$0xff]
    %v450 = vld [vmem:[#allocation5 + $0x130] sm:$0xff]
    %v451 = vld [vmem:[#allocation5 + $0x138] sm:$0xff]
    %v452 = vld [vmem:[#allocation5 + $0x140] sm:$0xff]
    %v453 = vld [vmem:[#allocation5 + $0x148] sm:$0xff]
    %v454 = vld [vmem:[#allocation5 + $0x150] sm:$0xff]
    %v455 = vld [vmem:[#allocation5 + $0x158] sm:$0xff]
    %v456 = vld [vmem:[#allocation5 + $0x160] sm:$0xff]
    %v457 = vld [vmem:[#allocation5 + $0x168] sm:$0xff]
    %v458 = vld [vmem:[#allocation5 + $0x170] sm:$0xff]
    %v459 = vld [vmem:[#allocation5 + $0x178] sm:$0xff]
    %v460 = vld [vmem:[#allocation5 + $0x180] sm:$0xff]
    %v461 = vld [vmem:[#allocation5 + $0x188] sm:$0xff]
    %v462 = vld [vmem:[#allocation5 + $0x190] sm:$0xff]
    %v463 = vld [vmem:[#allocation5 + $0x198] sm:$0xff]
    %v464 = vld [vmem:[#allocation5 + $0x1a0] sm:$0xff]
    %v465 = vld [vmem:[#allocation5 + $0x1a8] sm:$0xff]
    %v466 = vld [vmem:[#allocation5 + $0x1b0] sm:$0xff]
    %v467 = vld [vmem:[#allocation5 + $0x1b8] sm:$0xff]
    %v468 = vld [vmem:[#allocation5 + $0x1c0] sm:$0xff]
    %v469 = vld [vmem:[#allocation5 + $0x1c8] sm:$0xff]
    %v470 = vld [vmem:[#allocation5 + $0x1d0] sm:$0xff]
    %v471 = vld [vmem:[#allocation5 + $0x1d8] sm:$0xff]
    %v472 = vld [vmem:[#allocation5 + $0x1e0] sm:$0xff]
    %v473 = vld [vmem:[#allocation5 + $0x1e8] sm:$0xff]
    %v474 = vld [vmem:[#allocation5 + $0x1f0] sm:$0xff]
    %v475 = vld [vmem:[#allocation5 + $0x1f8] sm:$0xff]
    %v476 = vld [vmem:[%s4] sm:$0x3]
    %v478 = vlaneseq
    %v479 = vshrl.u32 %v478, 7
    %v480 = vsub.s32 0, %v479
    %v481 = vrot.slane %v476, %v480
    %v482 = vlaneseq
    %v483 = vshrl.u32 %v482, 7
    %v484 = vsub.s32 1, %v483
    %v485 = vrot.slane %v476, %v484
    %488 = vmatprep.subr.mxu0 %v413
    %489 = vmatpush1.msra.mxu0 %v412
    %490 = vmatprep.subr.mxu0 %v415
    %491 = vmatpush1.msra.mxu0 %v414
    %492 = vmatprep.subr.mxu0 %v417
    %493 = vmatpush1.msra.mxu0 %v416
    %494 = vmatprep.subr.mxu0 %v419
    %495 = vmatpush1.msra.mxu0 %v418
    %496 = vmatprep.subr.mxu0 %v421
    %497 = vmatpush1.msra.mxu0 %v420
    %498 = vmatprep.subr.mxu0 %v423
    %499 = vmatpush1.msra.mxu0 %v422
    %500 = vmatprep.subr.mxu0 %v425
    %501 = vmatpush1.msra.mxu0 %v424
    %502 = vmatprep.subr.mxu0 %v427
    %503 = vmatpush1.msra.mxu0 %v426
    %504 = vmatprep.subr.mxu0 %v429
    %505 = vmatpush1.msra.mxu0 %v428
    %506 = vmatprep.subr.mxu0 %v431
    %507 = vmatpush1.msra.mxu0 %v430
    %508 = vmatprep.subr.mxu0 %v433
    %509 = vmatpush1.msra.mxu0 %v432
    %510 = vmatprep.subr.mxu0 %v435
    %511 = vmatpush1.msra.mxu0 %v434
    %512 = vmatprep.subr.mxu0 %v437
    %513 = vmatpush1.msra.mxu0 %v436
    %514 = vmatprep.subr.mxu0 %v439
    %515 = vmatpush1.msra.mxu0 %v438
    %516 = vmatprep.subr.mxu0 %v441
    %517 = vmatpush1.msra.mxu0 %v440
    %518 = vmatprep.subr.mxu0 %v443
    %519 = vmatpush1.msra.mxu0 %v442
    %520 = vmatprep.subr.mxu0 %v445
    %521 = vmatpush1.msra.mxu0 %v444
    %522 = vmatprep.subr.mxu0 %v447
    %523 = vmatpush1.msra.mxu0 %v446
    %524 = vmatprep.subr.mxu0 %v449
    %525 = vmatpush1.msra.mxu0 %v448
    %526 = vmatprep.subr.mxu0 %v451
    %527 = vmatpush1.msra.mxu0 %v450
    %528 = vmatprep.subr.mxu0 %v453
    %529 = vmatpush1.msra.mxu0 %v452
    %530 = vmatprep.subr.mxu0 %v455
    %531 = vmatpush1.msra.mxu0 %v454
    %532 = vmatprep.subr.mxu0 %v457
    %533 = vmatpush1.msra.mxu0 %v456
    %534 = vmatprep.subr.mxu0 %v459
    %535 = vmatpush1.msra.mxu0 %v458
    %536 = vmatprep.subr.mxu0 %v461
    %537 = vmatpush1.msra.mxu0 %v460
    %538 = vmatprep.subr.mxu0 %v463
    %539 = vmatpush1.msra.mxu0 %v462
    %540 = vmatprep.subr.mxu0 %v465
    %541 = vmatpush1.msra.mxu0 %v464
    %542 = vmatprep.subr.mxu0 %v467
    %543 = vmatpush1.msra.mxu0 %v466
    %544 = vmatprep.subr.mxu0 %v469
    %545 = vmatpush1.msra.mxu0 %v468
    %546 = vmatprep.subr.mxu0 %v471
    %547 = vmatpush1.msra.mxu0 %v470
    %548 = vmatprep.subr.mxu0 %v473
    %549 = vmatpush1.msra.mxu0 %v472
    %550 = vmatprep.subr.mxu0 %v475
    %551 = vmatpush1.msra.mxu0 %v474
    %552 = vmatprep.mubr.f32.mxu0 %v411
    %553 = vmatmul.mubr.f32.gmra.mrb[0].mxu0 %v410
    %v554 = vpop.f32.mrb[0].mxu0
    %v555 = vadd.f32 %v481, %v554
    %v556 = vpop.f32.mrb[0].mxu0
    %v557 = vadd.f32 %v485, %v556
    %558 = vdwg.mxu0
    %v559 = vmax.f32 %v555, 0.0
    %v560 = vmax.f32 %v557, 0.0
    %v561 = vld [vmem:[%s5] sm:$0xff]
    %v562 = vld [vmem:[%s5 + $0x8] sm:$0xff]
    %v563 = vld [vmem:[%s5 + $0x10] sm:$0xff]
    %v564 = vld [vmem:[%s5 + $0x18] sm:$0xff]
    %v565 = vld [vmem:[%s5 + $0x20] sm:$0xff]
    %v566 = vld [vmem:[%s5 + $0x28] sm:$0xff]
    %v567 = vld [vmem:[%s5 + $0x30] sm:$0xff]
    %v568 = vld [vmem:[%s5 + $0x38] sm:$0xff]
    %v569 = vld [vmem:[%s5 + $0x40] sm:$0xff]
    %v570 = vld [vmem:[%s5 + $0x48] sm:$0xff]
    %v571 = vld [vmem:[%s5 + $0x50] sm:$0xff]
    %v572 = vld [vmem:[%s5 + $0x58] sm:$0xff]
    %v573 = vld [vmem:[%s5 + $0x60] sm:$0xff]
    %v574 = vld [vmem:[%s5 + $0x68] sm:$0xff]
    %v575 = vld [vmem:[%s5 + $0x70] sm:$0xff]
    %v576 = vld [vmem:[%s5 + $0x78] sm:$0xff]
    %v577 = vld [vmem:[%s5 + $0x80] sm:$0xff]
    %v578 = vld [vmem:[%s5 + $0x88] sm:$0xff]
    %v579 = vld [vmem:[%s5 + $0x90] sm:$0xff]
    %v580 = vld [vmem:[%s5 + $0x98] sm:$0xff]
    %v581 = vld [vmem:[%s5 + $0xa0] sm:$0xff]
    %v582 = vld [vmem:[%s5 + $0xa8] sm:$0xff]
    %v583 = vld [vmem:[%s5 + $0xb0] sm:$0xff]
    %v584 = vld [vmem:[%s5 + $0xb8] sm:$0xff]
    %v585 = vld [vmem:[%s5 + $0xc0] sm:$0xff]
    %v586 = vld [vmem:[%s5 + $0xc8] sm:$0xff]
    %v587 = vld [vmem:[%s5 + $0xd0] sm:$0xff]
    %v588 = vld [vmem:[%s5 + $0xd8] sm:$0xff]
    %v589 = vld [vmem:[%s5 + $0xe0] sm:$0xff]
    %v590 = vld [vmem:[%s5 + $0xe8] sm:$0xff]
    %v591 = vld [vmem:[%s5 + $0xf0] sm:$0xff]
    %v592 = vld [vmem:[%s5 + $0xf8] sm:$0xff]
    %v593 = vld [vmem:[%s6] sm:$0x1]
    %594 = vmatprep.subr.mxu0 0.0
    %595 = vmatpush1.msra.mxu0 %v561
    %596 = vmatprep.subr.mxu0 0.0
    %597 = vmatpush1.msra.mxu0 %v562
    %598 = vmatprep.subr.mxu0 0.0
    %599 = vmatpush1.msra.mxu0 %v563
    %600 = vmatprep.subr.mxu0 0.0
    %601 = vmatpush1.msra.mxu0 %v564
    %602 = vmatprep.subr.mxu0 0.0
    %603 = vmatpush1.msra.mxu0 %v565
    %604 = vmatprep.subr.mxu0 0.0
    %605 = vmatpush1.msra.mxu0 %v566
    %606 = vmatprep.subr.mxu0 0.0
    %607 = vmatpush1.msra.mxu0 %v567
    %608 = vmatprep.subr.mxu0 0.0
    %609 = vmatpush1.msra.mxu0 %v568
    %610 = vmatprep.subr.mxu0 0.0
    %611 = vmatpush1.msra.mxu0 %v569
    %612 = vmatprep.subr.mxu0 0.0
    %613 = vmatpush1.msra.mxu0 %v570
    %614 = vmatprep.subr.mxu0 0.0
    %615 = vmatpush1.msra.mxu0 %v571
    %616 = vmatprep.subr.mxu0 0.0
    %617 = vmatpush1.msra.mxu0 %v572
    %618 = vmatprep.subr.mxu0 0.0
    %619 = vmatpush1.msra.mxu0 %v573
    %620 = vmatprep.subr.mxu0 0.0
    %621 = vmatpush1.msra.mxu0 %v574
    %622 = vmatprep.subr.mxu0 0.0
    %623 = vmatpush1.msra.mxu0 %v575
    %624 = vmatprep.subr.mxu0 0.0
    %625 = vmatpush1.msra.mxu0 %v576
    %626 = vmatprep.subr.mxu0 0.0
    %627 = vmatpush1.msra.mxu0 %v577
    %628 = vmatprep.subr.mxu0 0.0
    %629 = vmatpush1.msra.mxu0 %v578
    %630 = vmatprep.subr.mxu0 0.0
    %631 = vmatpush1.msra.mxu0 %v579
    %632 = vmatprep.subr.mxu0 0.0
    %633 = vmatpush1.msra.mxu0 %v580
    %634 = vmatprep.subr.mxu0 0.0
    %635 = vmatpush1.msra.mxu0 %v581
    %636 = vmatprep.subr.mxu0 0.0
    %637 = vmatpush1.msra.mxu0 %v582
    %638 = vmatprep.subr.mxu0 0.0
    %639 = vmatpush1.msra.mxu0 %v583
    %640 = vmatprep.subr.mxu0 0.0
    %641 = vmatpush1.msra.mxu0 %v584
    %642 = vmatprep.subr.mxu0 0.0
    %643 = vmatpush1.msra.mxu0 %v585
    %644 = vmatprep.subr.mxu0 0.0
    %645 = vmatpush1.msra.mxu0 %v586
    %646 = vmatprep.subr.mxu0 0.0
    %647 = vmatpush1.msra.mxu0 %v587
    %648 = vmatprep.subr.mxu0 0.0
    %649 = vmatpush1.msra.mxu0 %v588
    %650 = vmatprep.subr.mxu0 0.0
    %651 = vmatpush1.msra.mxu0 %v589
    %652 = vmatprep.subr.mxu0 0.0
    %653 = vmatpush1.msra.mxu0 %v590
    %654 = vmatprep.subr.mxu0 0.0
    %655 = vmatpush1.msra.mxu0 %v591
    %656 = vmatprep.subr.mxu0 0.0
    %657 = vmatpush1.msra.mxu0 %v592
    %658 = vmatprep.mubr.f32.mxu0 %v560
    %659 = vmatmul.mubr.f32.gmra.mrb[0].mxu0 %v559
    %v660 = vpop.f32.mrb[0].mxu0
    %v661 = vadd.f32 %v593, %v660
    %v662 = vpop.f32.mrb[0].mxu0
    %663 = vdwg.mxu0
    %vm664 = vcmask 516096
    %665 = vst.msk [vmem:[#allocation7] sm:$0x1] %vm664, %v661
    // Predicated region
    $region38: #{tpu_custom_call.1} parent=1 // pred_check
      _
    $region39: #{tpu_custom_call.1} parent=1 // pred_check_branch
      %667 = sbr.rel (0) target = $region41
    $region40: #{tpu_custom_call.1} parent=1 // pred_region
      %s669 = ssub.s32 16, 16
      %670 = vsyncadd [#allocation4], %s669
      %s672 = sshll.u32 [#allocation7], 4
      %s673 = int_to_ptr.vmem [resolvable:$true] %s672
      %675 = dma.vmem_to_hbm [thread:$0]  %s673, 16, %s7, [#allocation4]
    $region41: #{tpu_custom_call.1} parent=1 // pred_fallthru
      _
    // Predicated region
    $region42: #{tpu_custom_call.1} parent=1 // pred_check
      _
    $region43: #{tpu_custom_call.1} parent=1 // pred_check_branch
      %677 = sbr.rel (0) target = $region45
    $region44: #{tpu_custom_call.1} parent=1 // pred_region
      %678 = dma.done [#allocation4], 16
    $region45: #{tpu_custom_call.1} parent=1 // pred_fallthru
      _
    %679 = vsyncpa [#allocation3], 1
    %680 = vsyncpa [#allocation6], 1
    %681 = vsyncpa [#allocation4], 1

</llo_original>
